<compile_context>
chip_gen: v5e
topology: v5e:2x2
jax: 0.10.0
libtpu: 0.0.40
codegen_flags: <defaults>
</compile_context>

<pallas_src>
import functools

import jax
import jax.numpy as jnp
from jax.experimental import pallas as pl
from jax.experimental.pallas import tpu as pltpu

LANE = 128
SUBL = 16          # keep row counts multiples of 16 (bf16 sublane packing)
EPS = 1e-5


def _round_up(x, m):
    return ((x + m - 1) // m) * m


def _vmem_capacity_bytes():
    try:
        return int(pltpu.get_tpu_info().vmem_capacity_bytes)
    except Exception:
        return 64 * 1024 * 1024       # conservative fallback (v7x per-TC VMEM)


def _pick_tl(L, P, row_bytes, fixed_bytes, budget_bytes, tl_cap):
    """Largest multiple-of-SUBL L-tile fitting the VMEM budget (and >= P)."""
    min_tl = _round_up(max(P, SUBL), SUBL)
    l_full = _round_up(max(L, SUBL), SUBL)
    avail = max(budget_bytes - fixed_bytes, 0)
    tl = (avail // max(row_bytes, 1)) // SUBL * SUBL
    tl = max(tl, min_tl)
    if tl_cap is not None:
        tl = max(min(tl, max(tl_cap // SUBL * SUBL, SUBL)), min_tl)
    return min(tl, l_full)


# ---------------------------------------------------------------------------
# Fused kernel: conv1+BN+ReLU -> conv2+BN+ReLU -> (+residual) -> ReLU
# ---------------------------------------------------------------------------
def _tcn_block_kernel(*refs, TL, K, d, P, Cin_p, Cout_p, multi_tile,
                      has_downsample):
    if has_downsample:
        (x_ref, w1_ref, sh1_ref, w2_ref, sh2_ref, wd_ref, bd_ref, o_ref,
         im_ref, h_ref, xc_ref, hc_ref) = refs
    else:
        (x_ref, w1_ref, sh1_ref, w2_ref, sh2_ref, o_ref,
         im_ref, h_ref, xc_ref, hc_ref) = refs
        wd_ref = bd_ref = None

    t = pl.program_id(1)

    # ---- reset the causal-pad carries at the start of each sequence --------
    if P > 0:
        if multi_tile:
            @pl.when(t == 0)
            def _():
                xc_ref[...] = jnp.zeros_like(xc_ref)
                hc_ref[...] = jnp.zeros_like(hc_ref)
        else:
            xc_ref[...] = jnp.zeros_like(xc_ref)
            hc_ref[...] = jnp.zeros_like(hc_ref)

    # ---- conv1: im2col built straight from (carry | current x tile) --------
    for k in range(K):
        off = min(max(P - k * d, 0), TL)          # rows coming from the carry
        col = k * Cin_p
        if off > 0:
            im_ref[0:off, col:col + Cin_p] = xc_ref[k * d:k * d + off, :]
        if off < TL:
            im_ref[off:TL, col:col + Cin_p] = x_ref[0, 0:TL - off, :]
    acc1 = jnp.dot(im_ref[:, 0:K * Cin_p], w1_ref[...],
                   preferred_element_type=jnp.float32)       # (TL, Cout_p)
    h_ref[...] = jnp.maximum(acc1 + sh1_ref[...], 0.0).astype(h_ref.dtype)

    # x carry for the next tile (last P rows of the current x tile)
    if P > 0 and multi_tile:
        xc_ref[...] = x_ref[0, TL - P:TL, :]

    # ---- conv2: same scheme, reusing the same im2col slab (im1 is dead) ----
    for k in range(K):
        off = min(max(P - k * d, 0), TL)
        col = k * Cout_p
        if off > 0:
            im_ref[0:off, col:col + Cout_p] = hc_ref[k * d:k * d + off, :]
        if off < TL:
            im_ref[off:TL, col:col + Cout_p] = h_ref[0:TL - off, :]
    acc2 = jnp.dot(im_ref[:, 0:K * Cout_p], w2_ref[...],
                   preferred_element_type=jnp.float32)       # (TL, Cout_p)
    out2 = jnp.maximum(acc2 + sh2_ref[...], 0.0)

    # h carry for the next tile
    if P > 0 and multi_tile:
        hc_ref[...] = h_ref[TL - P:TL, :]

    # ---- residual + final ReLU (kept in f32) --------------------------------
    if has_downsample:
        res = jnp.dot(x_ref[0], wd_ref[...],
                      preferred_element_type=jnp.float32) + bd_ref[...]
    else:
        res = x_ref[0].astype(jnp.float32)        # identity (Cin == Cout)
    o_ref[0] = jnp.maximum(out2 + res, 0.0).astype(o_ref.dtype)


# ---------------------------------------------------------------------------
# Parameter prep (plain JAX, one-time transforms)
# ---------------------------------------------------------------------------
def weight_norm_weight(v, g):
    # PyTorch weight_norm default dim=0: per-output-channel norm over (C_in, K).
    norm = jnp.sqrt(jnp.sum(v * v, axis=(1, 2), keepdims=True))
    return g[:, None, None] * v / norm


def _bn_fold(conv_bias, gamma, beta, rm, rv):
    scale = gamma / jnp.sqrt(rv + EPS)                 # folded into weights
    shift = (conv_bias - rm) * scale + beta            # stays as "+ shift"
    return scale, shift


def _conv_w_to_mat(w, cin_p, cout_p):
    # (C_out, C_in, K) -> im2col weight matrix (K*Cin_p, Cout_p)
    cout, cin, K = w.shape
    wk = jnp.transpose(w, (2, 1, 0))                   # (K, C_in, C_out)
    wk = jnp.pad(wk, ((0, 0), (0, cin_p - cin), (0, cout_p - cout)))
    return wk.reshape(K * cin_p, cout_p)


# ---------------------------------------------------------------------------
# Wrappers
# ---------------------------------------------------------------------------
def temporal_block_forward_nlc(x_blc, p, ksize, dilation, padding, *,
                               tl_cap=None):
    """Channels-last entry point: x_blc (B, L, Cin) f32 -> (B, L, Cout) f32.

    For stacked TemporalBlocks call this directly so the NCL<->NLC transposes
    happen once at model entry/exit rather than per block.
    """
    assert padding == dilation * (ksize - 1), "causal TCN padding assumed"
    B, L, Cin = x_blc.shape
    Cout = p["g1"].shape[0]
    K, P, d = ksize, padding, dilation
    has_downsample = p.get("wd", None) is not None
    if not has_downsample:
        assert Cin == Cout, "identity residual requires n_in == n_out"

    Cin_p = _round_up(Cin, LANE)
    Cout_p = _round_up(Cout, LANE)
    Cmax = max(Cin_p, Cout_p)

    # --- fold weight-norm + BN scale into bf16 matmul weights ----------------
    s1, sh1 = _bn_fold(p["b1"], p["gamma1"], p["beta1"], p["rm1"], p["rv1"])
    s2, sh2 = _bn_fold(p["b2"], p["gamma2"], p["beta2"], p["rm2"], p["rv2"])
    w1 = weight_norm_weight(p["v1"], p["g1"]) * s1[:, None, None]
    w2 = weight_norm_weight(p["v2"], p["g2"]) * s2[:, None, None]
    w1_mat = _conv_w_to_mat(w1, Cin_p, Cout_p).astype(jnp.bfloat16)
    w2_mat = _conv_w_to_mat(w2, Cout_p, Cout_p).astype(jnp.bfloat16)
    shift1 = jnp.pad(sh1, (0, Cout_p - Cout))[None, :].astype(jnp.float32)
    shift2 = jnp.pad(sh2, (0, Cout_p - Cout))[None, :].astype(jnp.float32)
    if has_downsample:
        wd = jnp.transpose(p["wd"][:, :, 0], (1, 0))             # (Cin, Cout)
        wd = jnp.pad(wd, ((0, Cin_p - Cin),
                          (0, Cout_p - Cout))).astype(jnp.bfloat16)
        bd = jnp.pad(p["bd"], (0, Cout_p - Cout))[None, :].astype(jnp.float32)

    # --- chip-aware tile size from a VMEM byte budget -------------------------
    cap = _vmem_capacity_bytes()
    vmem_limit = min(int(cap * 3 // 4), 100 * 1024 * 1024)
    row_bytes = (2 * K * Cmax            # shared im2col slab (bf16)
                 + 2 * Cout_p            # h scratch (bf16)
                 + 2 * 2 * Cin_p         # double-buffered x tile (bf16)
                 + 2 * 4 * Cout_p)       # double-buffered out tile (f32)
    fixed_bytes = (4 * (K * Cin_p * Cout_p + K * Cout_p * Cout_p
                        + (Cin_p * Cout_p if has_downsample else 0))
                   + 32 * Cout_p
                   + 2 * max(P, 1) * (Cin_p + Cout_p))
    TL = _pick_tl(L, P, row_bytes, fixed_bytes, int(vmem_limit * 0.7), tl_cap)
    nt = -(-L // TL)
    L_pad = nt * TL
    multi_tile = nt > 1

    # --- bf16, channels-last, lane-dense input (pads stripped on output) -----
    x_p = jnp.pad(x_blc.astype(jnp.bfloat16),
                  ((0, 0), (0, L_pad - L), (0, Cin_p - Cin)))

    kernel = functools.partial(
        _tcn_block_kernel, TL=TL, K=K, d=d, P=P, Cin_p=Cin_p, Cout_p=Cout_p,
        multi_tile=multi_tile, has_downsample=has_downsample)

    def wspec(shape):
        return pl.BlockSpec(shape, lambda b, t: (0, 0))

    in_specs = [
        pl.BlockSpec((1, TL, Cin_p), lambda b, t: (b, t, 0)),   # x tile
        wspec((K * Cin_p, Cout_p)),                             # w1 (BN folded)
        wspec((1, Cout_p)),                                     # shift1
        wspec((K * Cout_p, Cout_p)),                            # w2 (BN folded)
        wspec((1, Cout_p)),                                     # shift2
    ]
    args = [x_p, w1_mat, shift1, w2_mat, shift2]
    if has_downsample:
        in_specs += [wspec((Cin_p, Cout_p)), wspec((1, Cout_p))]
        args += [wd, bd]

    flops = 2 * B * L_pad * (K * Cin_p * Cout_p + K * Cout_p * Cout_p
                             + (Cin_p * Cout_p if has_downsample else 0))
    bytes_accessed = (2 * B * L_pad * Cin_p + 4 * B * L_pad * Cout_p
                      + 2 * (K * Cin_p * Cout_p + K * Cout_p * Cout_p
                             + (Cin_p * Cout_p if has_downsample else 0)))

    out_p = pl.pallas_call(
        kernel,
        out_shape=jax.ShapeDtypeStruct((B, L_pad, Cout_p), jnp.float32),
        grid=(B, nt),
        in_specs=in_specs,
        out_specs=pl.BlockSpec((1, TL, Cout_p), lambda b, t: (b, t, 0)),
        scratch_shapes=[
            pltpu.VMEM((TL, K * Cmax), jnp.bfloat16),        # shared im2col slab
            pltpu.VMEM((TL, Cout_p), jnp.bfloat16),          # h = conv1+BN+ReLU
            pltpu.VMEM((max(P, 1), Cin_p), jnp.bfloat16),    # x causal carry
            pltpu.VMEM((max(P, 1), Cout_p), jnp.bfloat16),   # h causal carry
        ],
        compiler_params=pltpu.CompilerParams(
            dimension_semantics=("parallel", "arbitrary"),
            vmem_limit_bytes=vmem_limit),
        cost_estimate=pl.CostEstimate(flops=flops, transcendentals=0,
                                      bytes_accessed=bytes_accessed),
    )(*args)

    return out_p[:, :L, :Cout]


def temporal_block_forward(x_ncl, p, ksize, dilation, padding, *, tl_cap=None):
    """x_ncl: (B, C_in, L) float32, PyTorch NCL layout."""
    x_blc = jnp.transpose(x_ncl, (0, 2, 1))
    out = temporal_block_forward_nlc(x_blc, p, ksize, dilation, padding,
                                     tl_cap=tl_cap)
    return jnp.transpose(out, (0, 2, 1)).astype(x_ncl.dtype)


# ---------------------------------------------------------------------------
# Pure-JAX reference (mirrors PyTorch eval-mode forward, f32)
# ---------------------------------------------------------------------------
def ref_temporal_block(x, p, ksize, dilation, padding):
    def conv1d(x, w, b, pad, dil):
        out = jax.lax.conv_general_dilated(
            x, w, window_strides=(1,), padding=[(pad, pad)],
            rhs_dilation=(dil,), dimension_numbers=("NCH", "OIH", "NCH"))
        return out + b[None, :, None]

    def bn(x, gamma, beta, rm, rv):
        return ((x - rm[None, :, None]) / jnp.sqrt(rv + EPS)[None, :, None]
                * gamma[None, :, None] + beta[None, :, None])

    w1 = weight_norm_weight(p["v1"], p["g1"])
    w2 = weight_norm_weight(p["v2"], p["g2"])
    h = conv1d(x, w1, p["b1"], padding, dilation)[:, :, :-padding]
    h = jnp.maximum(bn(h, p["gamma1"], p["beta1"], p["rm1"], p["rv1"]), 0.0)
    h2 = conv1d(h, w2, p["b2"], padding, dilation)[:, :, :-padding]
    h2 = jnp.maximum(bn(h2, p["gamma2"], p["beta2"], p["rm2"], p["rv2"]), 0.0)
    if ("wd" in p) and (p["wd"] is not None):
        res = conv1d(x, p["wd"], p["bd"], 0, 1)
    else:
        res = x
    return jnp.maximum(h2 + res, 0.0)


# ---------------------------------------------------------------------------
def make_params(key, n_in, n_out, ksize):
    ks = jax.random.split(key, 12)
    p = {
        "v1": jax.random.normal(ks[0], (n_out, n_in, ksize), jnp.float32),
        "g1": jax.random.uniform(ks[1], (n_out,), jnp.float32, 0.5, 1.5),
        "b1": 0.1 * jax.random.normal(ks[2], (n_out,), jnp.float32),
        "gamma1": jax.random.uniform(ks[3], (n_out,), jnp.float32, 0.5, 1.5),
        "beta1": 0.1 * jax.random.normal(ks[4], (n_out,), jnp.float32),
        "rm1": 0.1 * jax.random.normal(ks[5], (n_out,), jnp.float32),
        "rv1": jax.random.uniform(ks[6], (n_out,), jnp.float32, 0.5, 1.5),
        "v2": jax.random.normal(ks[7], (n_out, n_out, ksize), jnp.float32),
        "g2": jax.random.uniform(ks[8], (n_out,), jnp.float32, 0.5, 1.5),
        "b2": 0.1 * jax.random.normal(ks[9], (n_out,), jnp.float32),
        "gamma2": jax.random.uniform(ks[10], (n_out,), jnp.float32, 0.5, 1.5),
        "beta2": 0.1 * jax.random.normal(ks[11], (n_out,), jnp.float32),
    }
    k2 = jax.random.split(jax.random.fold_in(key, 123), 4)
    p["rm2"] = 0.1 * jax.random.normal(k2[0], (n_out,), jnp.float32)
    p["rv2"] = jax.random.uniform(k2[1], (n_out,), jnp.float32, 0.5, 1.5)
    if n_in != n_out:
        p["wd"] = jax.random.normal(k2[2], (n_out, n_in, 1), jnp.float32)
        p["bd"] = 0.1 * jax.random.normal(k2[3], (n_out,), jnp.float32)
    else:
        p["wd"] = None
        p["bd"] = None
    return p


if __name__ == "__main__":
    key = jax.random.PRNGKey(0)

    # Config A: Cin != Cout (1x1 downsample residual), single L tile.
    B, n_in, n_out, L, K, d = 2, 4, 8, 16, 3, 2
    P = (K - 1) * d
    kx, kp, key = jax.random.split(key, 3)
    x = jax.random.normal(kx, (B, n_in, L), jnp.float32)
    params = make_params(kp, n_in, n_out, K)
    out = jax.block_until_ready(temporal_block_forward(x, params, K, d, P))
    ref = jax.block_until_ready(ref_temporal_block(x, params, K, d, P))
    assert out.shape == (B, n_out, L), out.shape
    assert jnp.allclose(out, ref, rtol=2e-2, atol=2e-2), (
        float(jnp.max(jnp.abs(out - ref))))

    # Config B: identity residual, multiple L tiles (exercises the carry path).
    B, n_in, n_out, L, K, d = 2, 8, 8, 48, 3, 2
    P = (K - 1) * d
    kx, kp, key = jax.random.split(key, 3)
    x = jax.random.normal(kx, (B, n_in, L), jnp.float32)
    params = make_params(kp, n_in, n_out, K)
    out = jax.block_until_ready(
        temporal_block_forward(x, params, K, d, P, tl_cap=16))
    ref = jax.block_until_ready(ref_temporal_block(x, params, K, d, P))
    assert out.shape == (B, n_out, L), out.shape
    assert jnp.allclose(out, ref, rtol=2e-2, atol=2e-2), (
        float(jnp.max(jnp.abs(out - ref))))

    print("KERNEL_OK")
</pallas_src>

<mosaic_0001>
module attributes {stable_mosaic.version = 11 : i64} {
  func.func @_tcn_block_kernel(%arg0: i32, %arg1: i32, %arg2: memref<1x16x128xbf16, #tpu.memory_space<vmem>>, %arg3: memref<384x128xbf16, #tpu.memory_space<vmem>>, %arg4: memref<1x128xf32, #tpu.memory_space<vmem>>, %arg5: memref<384x128xbf16, #tpu.memory_space<vmem>>, %arg6: memref<1x128xf32, #tpu.memory_space<vmem>>, %arg7: memref<128x128xbf16, #tpu.memory_space<vmem>>, %arg8: memref<1x128xf32, #tpu.memory_space<vmem>>, %arg9: memref<1x16x128xf32, #tpu.memory_space<vmem>>, %arg10: memref<16x384xbf16, #tpu.memory_space<vmem>>, %arg11: memref<16x128xbf16, #tpu.memory_space<vmem>>, %arg12: memref<4x128xbf16, #tpu.memory_space<vmem>>, %arg13: memref<4x128xbf16, #tpu.memory_space<vmem>>) attributes {dimension_semantics = [#tpu.dimension_semantics<parallel>, #tpu.dimension_semantics<arbitrary>], iteration_bounds = array<i64: 2, 1>, scalar_prefetch = 0 : i64, scratch_operands = 4 : i64, tpu.core_type = #tpu.core_type<tc>, window_params = [{transform_indices = @transform_0, window_bounds = array<i64: 1, 16, 128>}, {pipeline_mode = #tpu.pipeline_mode<synchronous>, transform_indices = @transform_1, window_bounds = array<i64: 384, 128>}, {pipeline_mode = #tpu.pipeline_mode<synchronous>, transform_indices = @transform_2, window_bounds = array<i64: 1, 128>}, {pipeline_mode = #tpu.pipeline_mode<synchronous>, transform_indices = @transform_3, window_bounds = array<i64: 384, 128>}, {pipeline_mode = #tpu.pipeline_mode<synchronous>, transform_indices = @transform_4, window_bounds = array<i64: 1, 128>}, {pipeline_mode = #tpu.pipeline_mode<synchronous>, transform_indices = @transform_5, window_bounds = array<i64: 128, 128>}, {pipeline_mode = #tpu.pipeline_mode<synchronous>, transform_indices = @transform_6, window_bounds = array<i64: 1, 128>}, {transform_indices = @transform_7, window_bounds = array<i64: 1, 16, 128>}]} {
    %cst = arith.constant 0.000000e+00 : bf16
    %0 = vector.broadcast %cst : bf16 to vector<4x128xbf16>
    %c0 = arith.constant 0 : index
    %c0_0 = arith.constant 0 : index
    %1 = vector.load %arg12[%c0, %c0_0] : memref<4x128xbf16, #tpu.memory_space<vmem>>, vector<4x128xbf16>
    tpu.vector_store %arg12[%c0, %c0_0], %0 {strides = array<i32>} : memref<4x128xbf16, #tpu.memory_space<vmem>>, vector<4x128xbf16>,
    %cst_1 = arith.constant 0.000000e+00 : bf16
    %2 = vector.broadcast %cst_1 : bf16 to vector<4x128xbf16>
    %c0_2 = arith.constant 0 : index
    %c0_3 = arith.constant 0 : index
    %3 = vector.load %arg13[%c0_2, %c0_3] : memref<4x128xbf16, #tpu.memory_space<vmem>>, vector<4x128xbf16>
    tpu.vector_store %arg13[%c0_2, %c0_3], %2 {strides = array<i32>} : memref<4x128xbf16, #tpu.memory_space<vmem>>, vector<4x128xbf16>,
    %c0_4 = arith.constant 0 : index
    %c0_5 = arith.constant 0 : index
    %4 = vector.load %arg12[%c0_4, %c0_5] : memref<4x128xbf16, #tpu.memory_space<vmem>>, vector<4x128xbf16>
    %c0_6 = arith.constant 0 : index
    %c0_7 = arith.constant 0 : index
    %5 = vector.load %arg10[%c0_6, %c0_7] : memref<16x384xbf16, #tpu.memory_space<vmem>>, vector<4x128xbf16>
    tpu.vector_store %arg10[%c0_6, %c0_7], %4 {strides = array<i32>} : memref<16x384xbf16, #tpu.memory_space<vmem>>, vector<4x128xbf16>,
    %c0_8 = arith.constant 0 : index
    %c0_9 = arith.constant 0 : index
    %c0_10 = arith.constant 0 : index
    %6 = vector.load %arg2[%c0_8, %c0_9, %c0_10] : memref<1x16x128xbf16, #tpu.memory_space<vmem>>, vector<1x12x128xbf16>
    %7 = vector.shape_cast %6 : vector<1x12x128xbf16> to vector<12x128xbf16>
    %c4 = arith.constant 4 : index
    %c0_11 = arith.constant 0 : index
    %8 = vector.load %arg10[%c4, %c0_11] : memref<16x384xbf16, #tpu.memory_space<vmem>>, vector<12x128xbf16>
    tpu.vector_store %arg10[%c4, %c0_11], %7 {strides = array<i32>} : memref<16x384xbf16, #tpu.memory_space<vmem>>, vector<12x128xbf16>,
    %c2 = arith.constant 2 : index
    %c0_12 = arith.constant 0 : index
    %9 = vector.load %arg12[%c2, %c0_12] : memref<4x128xbf16, #tpu.memory_space<vmem>>, vector<2x128xbf16>
    %c0_13 = arith.constant 0 : index
    %c128 = arith.constant 128 : index
    %10 = vector.load %arg10[%c0_13, %c128] : memref<16x384xbf16, #tpu.memory_space<vmem>>, vector<2x128xbf16>
    tpu.vector_store %arg10[%c0_13, %c128], %9 {strides = array<i32>} : memref<16x384xbf16, #tpu.memory_space<vmem>>, vector<2x128xbf16>,
    %c0_14 = arith.constant 0 : index
    %c0_15 = arith.constant 0 : index
    %c0_16 = arith.constant 0 : index
    %11 = vector.load %arg2[%c0_14, %c0_15, %c0_16] : memref<1x16x128xbf16, #tpu.memory_space<vmem>>, vector<1x14x128xbf16>
    %12 = vector.shape_cast %11 : vector<1x14x128xbf16> to vector<14x128xbf16>
    %c2_17 = arith.constant 2 : index
    %c128_18 = arith.constant 128 : index
    %13 = vector.load %arg10[%c2_17, %c128_18] : memref<16x384xbf16, #tpu.memory_space<vmem>>, vector<14x128xbf16>
    tpu.vector_store %arg10[%c2_17, %c128_18], %12 {strides = array<i32>} : memref<16x384xbf16, #tpu.memory_space<vmem>>, vector<14x128xbf16>,
    %c0_19 = arith.constant 0 : index
    %c0_20 = arith.constant 0 : index
    %c0_21 = arith.constant 0 : index
    %14 = vector.load %arg2[%c0_19, %c0_20, %c0_21] : memref<1x16x128xbf16, #tpu.memory_space<vmem>>, vector<1x16x128xbf16>
    %15 = vector.shape_cast %14 : vector<1x16x128xbf16> to vector<16x128xbf16>
    %c0_22 = arith.constant 0 : index
    %c256 = arith.constant 256 : index
    %16 = vector.load %arg10[%c0_22, %c256] : memref<16x384xbf16, #tpu.memory_space<vmem>>, vector<16x128xbf16>
    tpu.vector_store %arg10[%c0_22, %c256], %15 {strides = array<i32>} : memref<16x384xbf16, #tpu.memory_space<vmem>>, vector<16x128xbf16>,
    %c0_23 = arith.constant 0 : index
    %c0_24 = arith.constant 0 : index
    %17 = vector.load %arg10[%c0_23, %c0_24] : memref<16x384xbf16, #tpu.memory_space<vmem>>, vector<16x384xbf16>
    %c0_25 = arith.constant 0 : index
    %c0_26 = arith.constant 0 : index
    %18 = vector.load %arg3[%c0_25, %c0_26] : memref<384x128xbf16, #tpu.memory_space<vmem>>, vector<384x128xbf16>
    %cst_27 = arith.constant dense<0.000000e+00> : vector<16x128xf32>
    %19 = tpu.matmul %17, %18, %cst_27 {dimension_numbers = #tpu.dot_dimension_numbers<[1], [0], [0], [1], [0, 0, 1, 1], [], []>} : vector<16x384xbf16>, vector<384x128xbf16>, vector<16x128xf32> -> vector<16x128xf32>
    %c0_28 = arith.constant 0 : index
    %c0_29 = arith.constant 0 : index
    %20 = vector.load %arg4[%c0_28, %c0_29] : memref<1x128xf32, #tpu.memory_space<vmem>>, vector<1x128xf32>
    %21 = vector.broadcast %20 : vector<1x128xf32> to vector<16x128xf32>
    %22 = arith.addf %19, %21 : vector<16x128xf32>
    %cst_30 = arith.constant 0.000000e+00 : f32
    %23 = vector.broadcast %cst_30 : f32 to vector<16x128xf32>
    %24 = arith.maximumf %22, %23 : vector<16x128xf32>
    %25 = arith.truncf %24 : vector<16x128xf32> to vector<16x128xbf16>
    %c0_31 = arith.constant 0 : index
    %c0_32 = arith.constant 0 : index
    %26 = vector.load %arg11[%c0_31, %c0_32] : memref<16x128xbf16, #tpu.memory_space<vmem>>, vector<16x128xbf16>
    tpu.vector_store %arg11[%c0_31, %c0_32], %25 {strides = array<i32>} : memref<16x128xbf16, #tpu.memory_space<vmem>>, vector<16x128xbf16>,
    %c0_33 = arith.constant 0 : index
    %c0_34 = arith.constant 0 : index
    %27 = vector.load %arg13[%c0_33, %c0_34] : memref<4x128xbf16, #tpu.memory_space<vmem>>, vector<4x128xbf16>
    %c0_35 = arith.constant 0 : index
    %c0_36 = arith.constant 0 : index
    %28 = vector.load %arg10[%c0_35, %c0_36] : memref<16x384xbf16, #tpu.memory_space<vmem>>, vector<4x128xbf16>
    tpu.vector_store %arg10[%c0_35, %c0_36], %27 {strides = array<i32>} : memref<16x384xbf16, #tpu.memory_space<vmem>>, vector<4x128xbf16>,
    %c0_37 = arith.constant 0 : index
    %c0_38 = arith.constant 0 : index
    %29 = vector.load %arg11[%c0_37, %c0_38] : memref<16x128xbf16, #tpu.memory_space<vmem>>, vector<12x128xbf16>
    %c4_39 = arith.constant 4 : index
    %c0_40 = arith.constant 0 : index
    %30 = vector.load %arg10[%c4_39, %c0_40] : memref<16x384xbf16, #tpu.memory_space<vmem>>, vector<12x128xbf16>
    tpu.vector_store %arg10[%c4_39, %c0_40], %29 {strides = array<i32>} : memref<16x384xbf16, #tpu.memory_space<vmem>>, vector<12x128xbf16>,
    %c2_41 = arith.constant 2 : index
    %c0_42 = arith.constant 0 : index
    %31 = vector.load %arg13[%c2_41, %c0_42] : memref<4x128xbf16, #tpu.memory_space<vmem>>, vector<2x128xbf16>
    %c0_43 = arith.constant 0 : index
    %c128_44 = arith.constant 128 : index
    %32 = vector.load %arg10[%c0_43, %c128_44] : memref<16x384xbf16, #tpu.memory_space<vmem>>, vector<2x128xbf16>
    tpu.vector_store %arg10[%c0_43, %c128_44], %31 {strides = array<i32>} : memref<16x384xbf16, #tpu.memory_space<vmem>>, vector<2x128xbf16>,
    %c0_45 = arith.constant 0 : index
    %c0_46 = arith.constant 0 : index
    %33 = vector.load %arg11[%c0_45, %c0_46] : memref<16x128xbf16, #tpu.memory_space<vmem>>, vector<14x128xbf16>
    %c2_47 = arith.constant 2 : index
    %c128_48 = arith.constant 128 : index
    %34 = vector.load %arg10[%c2_47, %c128_48] : memref<16x384xbf16, #tpu.memory_space<vmem>>, vector<14x128xbf16>
    tpu.vector_store %arg10[%c2_47, %c128_48], %33 {strides = array<i32>} : memref<16x384xbf16, #tpu.memory_space<vmem>>, vector<14x128xbf16>,
    %c0_49 = arith.constant 0 : index
    %c0_50 = arith.constant 0 : index
    %35 = vector.load %arg11[%c0_49, %c0_50] : memref<16x128xbf16, #tpu.memory_space<vmem>>, vector<16x128xbf16>
    %c0_51 = arith.constant 0 : index
    %c256_52 = arith.constant 256 : index
    %36 = vector.load %arg10[%c0_51, %c256_52] : memref<16x384xbf16, #tpu.memory_space<vmem>>, vector<16x128xbf16>
    tpu.vector_store %arg10[%c0_51, %c256_52], %35 {strides = array<i32>} : memref<16x384xbf16, #tpu.memory_space<vmem>>, vector<16x128xbf16>,
    %c0_53 = arith.constant 0 : index
    %c0_54 = arith.constant 0 : index
    %37 = vector.load %arg10[%c0_53, %c0_54] : memref<16x384xbf16, #tpu.memory_space<vmem>>, vector<16x384xbf16>
    %c0_55 = arith.constant 0 : index
    %c0_56 = arith.constant 0 : index
    %38 = vector.load %arg5[%c0_55, %c0_56] : memref<384x128xbf16, #tpu.memory_space<vmem>>, vector<384x128xbf16>
    %cst_57 = arith.constant dense<0.000000e+00> : vector<16x128xf32>
    %39 = tpu.matmul %37, %38, %cst_57 {dimension_numbers = #tpu.dot_dimension_numbers<[1], [0], [0], [1], [0, 0, 1, 1], [], []>} : vector<16x384xbf16>, vector<384x128xbf16>, vector<16x128xf32> -> vector<16x128xf32>
    %c0_58 = arith.constant 0 : index
    %c0_59 = arith.constant 0 : index
    %40 = vector.load %arg6[%c0_58, %c0_59] : memref<1x128xf32, #tpu.memory_space<vmem>>, vector<1x128xf32>
    %41 = vector.broadcast %40 : vector<1x128xf32> to vector<16x128xf32>
    %42 = arith.addf %39, %41 : vector<16x128xf32>
    %cst_60 = arith.constant 0.000000e+00 : f32
    %43 = vector.broadcast %cst_60 : f32 to vector<16x128xf32>
    %44 = arith.maximumf %42, %43 : vector<16x128xf32>
    %c0_61 = arith.constant 0 : index
    %c0_62 = arith.constant 0 : index
    %c0_63 = arith.constant 0 : index
    %45 = vector.load %arg2[%c0_61, %c0_62, %c0_63] : memref<1x16x128xbf16, #tpu.memory_space<vmem>>, vector<1x16x128xbf16>
    %46 = vector.shape_cast %45 : vector<1x16x128xbf16> to vector<16x128xbf16>
    %c0_64 = arith.constant 0 : index
    %c0_65 = arith.constant 0 : index
    %47 = vector.load %arg7[%c0_64, %c0_65] : memref<128x128xbf16, #tpu.memory_space<vmem>>, vector<128x128xbf16>
    %cst_66 = arith.constant dense<0.000000e+00> : vector<16x128xf32>
    %48 = tpu.matmul %46, %47, %cst_66 {dimension_numbers = #tpu.dot_dimension_numbers<[1], [0], [0], [1], [0, 0, 1, 1], [], []>} : vector<16x128xbf16>, vector<128x128xbf16>, vector<16x128xf32> -> vector<16x128xf32>
    %c0_67 = arith.constant 0 : index
    %c0_68 = arith.constant 0 : index
    %49 = vector.load %arg8[%c0_67, %c0_68] : memref<1x128xf32, #tpu.memory_space<vmem>>, vector<1x128xf32>
    %50 = vector.broadcast %49 : vector<1x128xf32> to vector<16x128xf32>
    %51 = arith.addf %48, %50 : vector<16x128xf32>
    %52 = arith.addf %44, %51 : vector<16x128xf32>
    %cst_69 = arith.constant 0.000000e+00 : f32
    %53 = vector.broadcast %cst_69 : f32 to vector<16x128xf32>
    %54 = arith.maximumf %52, %53 : vector<16x128xf32>
    %c0_70 = arith.constant 0 : index
    %c0_71 = arith.constant 0 : index
    %c0_72 = arith.constant 0 : index
    %55 = vector.load %arg9[%c0_70, %c0_71, %c0_72] : memref<1x16x128xf32, #tpu.memory_space<vmem>>, vector<1x16x128xf32>
    %56 = vector.shape_cast %55 : vector<1x16x128xf32> to vector<16x128xf32>
    %57 = vector.shape_cast %54 : vector<16x128xf32> to vector<1x16x128xf32>
    tpu.vector_store %arg9[%c0_70, %c0_71, %c0_72], %57 {strides = array<i32>} : memref<1x16x128xf32, #tpu.memory_space<vmem>>, vector<1x16x128xf32>,
    return
  }
  func.func @transform_0(%arg0: i32, %arg1: i32) -> (i32, i32, i32) {
    %c0_i32 = arith.constant 0 : i32
    %c0_i32_0 = arith.constant 0 : i32
    return %arg0, %arg1, %c0_i32 : i32, i32, i32
  }
  func.func @transform_1(%arg0: i32, %arg1: i32) -> (i32, i32) {
    %c0_i32 = arith.constant 0 : i32
    %c0_i32_0 = arith.constant 0 : i32
    %c0_i32_1 = arith.constant 0 : i32
    return %c0_i32, %c0_i32_0 : i32, i32
  }
  func.func @transform_2(%arg0: i32, %arg1: i32) -> (i32, i32) {
    %c0_i32 = arith.constant 0 : i32
    %c0_i32_0 = arith.constant 0 : i32
    %c0_i32_1 = arith.constant 0 : i32
    return %c0_i32, %c0_i32_0 : i32, i32
  }
  func.func @transform_3(%arg0: i32, %arg1: i32) -> (i32, i32) {
    %c0_i32 = arith.constant 0 : i32
    %c0_i32_0 = arith.constant 0 : i32
    %c0_i32_1 = arith.constant 0 : i32
    return %c0_i32, %c0_i32_0 : i32, i32
  }
  func.func @transform_4(%arg0: i32, %arg1: i32) -> (i32, i32) {
    %c0_i32 = arith.constant 0 : i32
    %c0_i32_0 = arith.constant 0 : i32
    %c0_i32_1 = arith.constant 0 : i32
    return %c0_i32, %c0_i32_0 : i32, i32
  }
  func.func @transform_5(%arg0: i32, %arg1: i32) -> (i32, i32) {
    %c0_i32 = arith.constant 0 : i32
    %c0_i32_0 = arith.constant 0 : i32
    %c0_i32_1 = arith.constant 0 : i32
    return %c0_i32, %c0_i32_0 : i32, i32
  }
  func.func @transform_6(%arg0: i32, %arg1: i32) -> (i32, i32) {
    %c0_i32 = arith.constant 0 : i32
    %c0_i32_0 = arith.constant 0 : i32
    %c0_i32_1 = arith.constant 0 : i32
    return %c0_i32, %c0_i32_0 : i32, i32
  }
  func.func @transform_7(%arg0: i32, %arg1: i32) -> (i32, i32, i32) {
    %c0_i32 = arith.constant 0 : i32
    %c0_i32_0 = arith.constant 0 : i32
    return %arg0, %arg1, %c0_i32 : i32, i32, i32
  }
}

</mosaic_0001>

<llo_original>
// kernel: tpu_custom_call.1
$region0: #{tpu_custom_call.1}
  #allocation0 [shape = 'u32[]', space=smem, size = 0x4, offset = 0x4, fixed_abs, tag = 'smem constant byte address 0x4 - core index']
  #allocation1 [shape = 'u32[72,128]{1,0:T(1,128)}', space=vmem, size = 0x9000, scoped, tag = 'internal scratch']
  #allocation2 [shape = 'bf16[16,384]{1,0:T(8,128)(2,1)}', space=vmem, size = 0x3000, scoped, tag = 'scratch operand']
  #allocation3 [shape = 'bf16[16,128]{1,0:T(8,128)(2,1)}', space=vmem, size = 0x1000, scoped, tag = 'scratch operand']
  #allocation4 [shape = 'bf16[4,128]{1,0:T(4,128)(2,1)}', space=vmem, size = 0x400, scoped, tag = 'scratch operand']
  #allocation5 [shape = 'bf16[4,128]{1,0:T(4,128)(2,1)}', space=vmem, size = 0x400, scoped, tag = 'scratch operand']
  %s0 = inlined_call_operand.hbm [shape: bf16[2,16,128], index: 0, kind: input, shape index: {}]
  %s1 = inlined_call_operand.hbm [shape: bf16[384,128], index: 1, kind: input, shape index: {}]
  %s2 = inlined_call_operand.vmem [shape: f32[1,128], index: 2, kind: input, shape index: {}]
  %s3 = inlined_call_operand.hbm [shape: bf16[384,128], index: 3, kind: input, shape index: {}]
  %s4 = inlined_call_operand.vmem [shape: f32[1,128], index: 4, kind: input, shape index: {}]
  %s5 = inlined_call_operand.hbm [shape: bf16[128,128], index: 5, kind: input, shape index: {}]
  %s6 = inlined_call_operand.vmem [shape: f32[1,128], index: 6, kind: input, shape index: {}]
  %s7 = inlined_call_operand.hbm [shape: f32[2,16,128], index: 7, kind: output, shape index: {}]
  %s8 = sld [smem:[#allocation0]]
  $region77: #{tpu_custom_call.1} parent=0
    _
  %s10 = ssub.s32 1, %s8
  %s11 = scalar_select 0, %s10, %s8
  $region1: #{tpu_custom_call.1} parent=0
    #allocation6 [shape = 'u8[8192]{0}', space=vmem, size = 0x2000, scoped, tag = 'input window, operand 0']
    #allocation7 [shape = 's32[2]{0}', space=sflag, size = 0x8, scoped, tag = 'scoped memory for tpu_custom_call.1']
    #allocation8 [shape = 's32[2]{0}', space=sflag, size = 0x8, scoped, tag = 'scoped memory for tpu_custom_call.1']
    #allocation9 [shape = 'u8[98304]{0}', space=vmem, size = 0x18000, scoped, tag = 'input window, operand 1, single buffered']
    #allocation10 [shape = 's32[1]{0}', space=sflag, size = 0x4, scoped, tag = 'scoped memory for tpu_custom_call.1']
    #allocation11 [shape = 'u8[98304]{0}', space=vmem, size = 0x18000, scoped, tag = 'input window, operand 3, single buffered']
    #allocation12 [shape = 'u8[32768]{0}', space=vmem, size = 0x8000, scoped, tag = 'input window, operand 5, single buffered']
    #allocation13 [shape = 's32[1]{0}', space=sflag, size = 0x4, scoped, tag = 'scoped memory for tpu_custom_call.1']
    #allocation14 [shape = 'u8[16384]{0}', space=vmem, size = 0x4000, scoped, tag = 'output window, operand 0']
    %12 = vsyncpa [#allocation7], 0
    %s13 = scalar_lea.sflag [#allocation7], 1
    %14 = vsyncpa %s13, 0
    %15 = vsyncpa [#allocation10], 0
    %16 = vsyncpa [#allocation13], 0
    %17 = vsyncpa [#allocation8], 0
    %s18 = scalar_lea.sflag [#allocation8], 1
    %19 = vsyncpa %s18, 0
    loop: start=0, step=1, limit=4
    $region2: #{tpu_custom_call.1} parent=1 // loop_pre_header
      _
    $region3: #{tpu_custom_call.1} parent=1 // loop_header
      %s21 = sphi 0, %s25
      %p22 = scmp.ge.s32.totalorder %s21, 4
      %s28 = sphi 0, %s40
      %s29 = sphi 0, %s36
      %s30 = sphi 0, %s28
      %s31 = sphi 0, %s29
      %s32 = sphi 0, %s30
      %s33 = sphi 0, %s31
      %s45 = sphi 0, %s47
      %s48 = sphi 0, %s45
      %s49 = sphi 0, %s48
      %s65 = sphi 0, %s49
      %s69 = sphi 0, %s69
      %s71 = sphi 0, %s69
      %s72 = sphi 0, %s71
      %s86 = sphi 0, %s72
      %s90 = sphi 0, %s90
      %s92 = sphi 0, %s90
      %s93 = sphi 0, %s92
      %s107 = sphi 0, %s93
      %s111 = sphi 0, %s111
      %s113 = sphi 0, %s111
      %s114 = sphi 0, %s113
      %s128 = sphi 0, %s114
      %s132 = sphi 0, %s132
      %s134 = sphi 0, %s132
      %s135 = sphi 0, %s134
      %s149 = sphi 0, %s135
      %s153 = sphi 0, %s153
      %s155 = sphi 0, %s153
      %s156 = sphi 0, %s155
      %s170 = sphi 0, %s156
      %s174 = sphi 0, %s174
      %s176 = sphi 0, %s174
      %s177 = sphi 0, %s176
      %s191 = sphi 0, %s177
      %s199 = sphi 0, %s201
      %s202 = sphi 0, %s199
      %s203 = sphi 0, %s202
      %s219 = sphi 0, %s203
    $region4: #{tpu_custom_call.1} parent=1 // loop_header_branch
      %24 = sbr.rel (%p22) target = $region8
    $region5: #{tpu_custom_call.1} parent=1 // loop_body
      %s26 = ssub.s32 %s21, 1
      %s27 = ssub.s32 %s21, 2
      %s34 = sadd.s32 1, %s29
      %p35 = scmp.ge.s32.totalorder %s34, 1
      %s36 = scalar_select %p35, 0, %s34
      %s37 = sadd.s32 1, %s28
      %s38 = scalar_select %p35, %s37, %s28
      %p39 = scmp.ge.s32.totalorder %s38, 2
      %s40 = scalar_select %p39, 0, %s38
      %s41 = ssub.s32 %s28, %s40
      %s42 = ssub.s32 %s29, %s36
      %s43 = sor.u32 %s41, %s42
      %p44 = scmp.eq.s32.totalorder %s43, 0
      %s46 = sadd.s32 %s45, 1
      %s47 = scalar_select %p44, %s45, %s46
      %p50 = pneg %p44
      %p51 = scmp.eq.s32.totalorder %s21, 1
      %p52 = por %p50, %p51
      %p53 = scmp.ne.s32.totalorder %s45, %s48
      %p54 = scmp.eq.s32.totalorder %s21, 0
      %p55 = por %p53, %p54
      %p56 = scmp.ne.s32.totalorder %s45, %s48
      %p57 = scmp.eq.s32.totalorder %s26, 1
      %p58 = por %p56, %p57
      %p59 = scmp.ne.s32.totalorder %s48, %s49
      %p60 = scmp.eq.s32.totalorder %s26, 0
      %p61 = por %p59, %p60
      %p62 = scmp.ne.s32.totalorder %s48, %s49
      %p63 = scmp.eq.s32.totalorder %s27, 1
      %p64 = por %p62, %p63
      %p66 = scmp.ne.s32.totalorder %s49, %s65
      %p67 = scmp.eq.s32.totalorder %s27, 0
      %p68 = por %p66, %p67
      %s70 = sadd.s32 %s69, 1
      %p73 = scmp.eq.s32.totalorder %s21, 1
      %p74 = scmp.ne.s32.totalorder %s69, %s71
      %p75 = scmp.eq.s32.totalorder %s21, 0
      %p76 = por %p74, %p75
      %p77 = scmp.ne.s32.totalorder %s69, %s71
      %p78 = scmp.eq.s32.totalorder %s26, 1
      %p79 = por %p77, %p78
      %p80 = scmp.ne.s32.totalorder %s71, %s72
      %p81 = scmp.eq.s32.totalorder %s26, 0
      %p82 = por %p80, %p81
      %p83 = scmp.ne.s32.totalorder %s71, %s72
      %p84 = scmp.eq.s32.totalorder %s27, 1
      %p85 = por %p83, %p84
      %p87 = scmp.ne.s32.totalorder %s72, %s86
      %p88 = scmp.eq.s32.totalorder %s27, 0
      %p89 = por %p87, %p88
      %s91 = sadd.s32 %s90, 1
      %p94 = scmp.eq.s32.totalorder %s21, 1
      %p95 = scmp.ne.s32.totalorder %s90, %s92
      %p96 = scmp.eq.s32.totalorder %s21, 0
      %p97 = por %p95, %p96
      %p98 = scmp.ne.s32.totalorder %s90, %s92
      %p99 = scmp.eq.s32.totalorder %s26, 1
      %p100 = por %p98, %p99
      %p101 = scmp.ne.s32.totalorder %s92, %s93
      %p102 = scmp.eq.s32.totalorder %s26, 0
      %p103 = por %p101, %p102
      %p104 = scmp.ne.s32.totalorder %s92, %s93
      %p105 = scmp.eq.s32.totalorder %s27, 1
      %p106 = por %p104, %p105
      %p108 = scmp.ne.s32.totalorder %s93, %s107
      %p109 = scmp.eq.s32.totalorder %s27, 0
      %p110 = por %p108, %p109
      %s112 = sadd.s32 %s111, 1
      %p115 = scmp.eq.s32.totalorder %s21, 1
      %p116 = scmp.ne.s32.totalorder %s111, %s113
      %p117 = scmp.eq.s32.totalorder %s21, 0
      %p118 = por %p116, %p117
      %p119 = scmp.ne.s32.totalorder %s111, %s113
      %p120 = scmp.eq.s32.totalorder %s26, 1
      %p121 = por %p119, %p120
      %p122 = scmp.ne.s32.totalorder %s113, %s114
      %p123 = scmp.eq.s32.totalorder %s26, 0
      %p124 = por %p122, %p123
      %p125 = scmp.ne.s32.totalorder %s113, %s114
      %p126 = scmp.eq.s32.totalorder %s27, 1
      %p127 = por %p125, %p126
      %p129 = scmp.ne.s32.totalorder %s114, %s128
      %p130 = scmp.eq.s32.totalorder %s27, 0
      %p131 = por %p129, %p130
      %s133 = sadd.s32 %s132, 1
      %p136 = scmp.eq.s32.totalorder %s21, 1
      %p137 = scmp.ne.s32.totalorder %s132, %s134
      %p138 = scmp.eq.s32.totalorder %s21, 0
      %p139 = por %p137, %p138
      %p140 = scmp.ne.s32.totalorder %s132, %s134
      %p141 = scmp.eq.s32.totalorder %s26, 1
      %p142 = por %p140, %p141
      %p143 = scmp.ne.s32.totalorder %s134, %s135
      %p144 = scmp.eq.s32.totalorder %s26, 0
      %p145 = por %p143, %p144
      %p146 = scmp.ne.s32.totalorder %s134, %s135
      %p147 = scmp.eq.s32.totalorder %s27, 1
      %p148 = por %p146, %p147
      %p150 = scmp.ne.s32.totalorder %s135, %s149
      %p151 = scmp.eq.s32.totalorder %s27, 0
      %p152 = por %p150, %p151
      %s154 = sadd.s32 %s153, 1
      %p157 = scmp.eq.s32.totalorder %s21, 1
      %p158 = scmp.ne.s32.totalorder %s153, %s155
      %p159 = scmp.eq.s32.totalorder %s21, 0
      %p160 = por %p158, %p159
      %p161 = scmp.ne.s32.totalorder %s153, %s155
      %p162 = scmp.eq.s32.totalorder %s26, 1
      %p163 = por %p161, %p162
      %p164 = scmp.ne.s32.totalorder %s155, %s156
      %p165 = scmp.eq.s32.totalorder %s26, 0
      %p166 = por %p164, %p165
      %p167 = scmp.ne.s32.totalorder %s155, %s156
      %p168 = scmp.eq.s32.totalorder %s27, 1
      %p169 = por %p167, %p168
      %p171 = scmp.ne.s32.totalorder %s156, %s170
      %p172 = scmp.eq.s32.totalorder %s27, 0
      %p173 = por %p171, %p172
      %s175 = sadd.s32 %s174, 1
      %p178 = scmp.eq.s32.totalorder %s21, 1
      %p179 = scmp.ne.s32.totalorder %s174, %s176
      %p180 = scmp.eq.s32.totalorder %s21, 0
      %p181 = por %p179, %p180
      %p182 = scmp.ne.s32.totalorder %s174, %s176
      %p183 = scmp.eq.s32.totalorder %s26, 1
      %p184 = por %p182, %p183
      %p185 = scmp.ne.s32.totalorder %s176, %s177
      %p186 = scmp.eq.s32.totalorder %s26, 0
      %p187 = por %p185, %p186
      %p188 = scmp.ne.s32.totalorder %s176, %s177
      %p189 = scmp.eq.s32.totalorder %s27, 1
      %p190 = por %p188, %p189
      %p192 = scmp.ne.s32.totalorder %s177, %s191
      %p193 = scmp.eq.s32.totalorder %s27, 0
      %p194 = por %p192, %p193
      %s195 = ssub.s32 %s28, %s40
      %s196 = ssub.s32 %s29, %s36
      %s197 = sor.u32 %s195, %s196
      %p198 = scmp.eq.s32.totalorder %s197, 0
      %s200 = sadd.s32 %s199, 1
      %s201 = scalar_select %p198, %s199, %s200
      %p204 = pneg %p198
      %p205 = scmp.eq.s32.totalorder %s21, 1
      %p206 = por %p204, %p205
      %p207 = scmp.ne.s32.totalorder %s199, %s202
      %p208 = scmp.eq.s32.totalorder %s21, 0
      %p209 = por %p207, %p208
      %p210 = scmp.ne.s32.totalorder %s199, %s202
      %p211 = scmp.eq.s32.totalorder %s26, 1
      %p212 = por %p210, %p211
      %p213 = scmp.ne.s32.totalorder %s202, %s203
      %p214 = scmp.eq.s32.totalorder %s26, 0
      %p215 = por %p213, %p214
      %p216 = scmp.ne.s32.totalorder %s202, %s203
      %p217 = scmp.eq.s32.totalorder %s27, 1
      %p218 = por %p216, %p217
      %p220 = scmp.ne.s32.totalorder %s203, %s219
      %p221 = scmp.eq.s32.totalorder %s27, 0
      %p222 = por %p220, %p221
      %p223 = scmp.le.s32.totalorder 1, %s21
      %p224 = scmp.lt.s32.totalorder %s21, 3
      %p225 = pnand %p223, %p224
      %p226 = pneg %p225
      // Predicated region
      $region9: #{tpu_custom_call.1} parent=5 // pred_check
        _
      $region10: #{tpu_custom_call.1} parent=5 // pred_check_branch
        %228 = sbr.rel (%p225) target = $region12
      $region11: #{tpu_custom_call.1} parent=5 // pred_region
        %s229 = ssub.s32 %s21, 1
        // Predicated region
        $region13: #{tpu_custom_call.1} parent=11 // pred_check
          %p230 = pneg %p82
        $region14: #{tpu_custom_call.1} parent=11 // pred_check_branch
          %232 = sbr.rel (%p230) target = $region16
        $region15: #{tpu_custom_call.1} parent=11 // pred_region
          %234 = vsyncadd [#allocation10], 0
          %s235 = sshll.u32 %s1, 4
          %s236 = int_to_ptr.hbm [resolvable:$true] %s235
          %s237 = sshll.u32 [#allocation9], 4
          %s238 = int_to_ptr.vmem [resolvable:$true] %s237
          %243 = dma.hbm_to_vmem [thread:$0]  %s236, 3072, %s238, [#allocation10], 64, 64, 4
        $region16: #{tpu_custom_call.1} parent=11 // pred_fallthru
          _
        // Predicated region
        $region17: #{tpu_custom_call.1} parent=11 // pred_check
          %p244 = pneg %p103
        $region18: #{tpu_custom_call.1} parent=11 // pred_check_branch
          %246 = sbr.rel (%p244) target = $region20
        $region19: #{tpu_custom_call.1} parent=11 // pred_region
          _
        $region20: #{tpu_custom_call.1} parent=11 // pred_fallthru
          _
        // Predicated region
        $region21: #{tpu_custom_call.1} parent=11 // pred_check
          %p247 = pneg %p124
        $region22: #{tpu_custom_call.1} parent=11 // pred_check_branch
          %249 = sbr.rel (%p247) target = $region24
        $region23: #{tpu_custom_call.1} parent=11 // pred_region
          %251 = vsyncadd [#allocation10], 0
          %s252 = sshll.u32 %s3, 4
          %s253 = int_to_ptr.hbm [resolvable:$true] %s252
          %s254 = sshll.u32 [#allocation11], 4
          %s255 = int_to_ptr.vmem [resolvable:$true] %s254
          %260 = dma.hbm_to_vmem [thread:$0]  %s253, 3072, %s255, [#allocation10], 64, 64, 4
        $region24: #{tpu_custom_call.1} parent=11 // pred_fallthru
          _
        // Predicated region
        $region25: #{tpu_custom_call.1} parent=11 // pred_check
          %p261 = pneg %p145
        $region26: #{tpu_custom_call.1} parent=11 // pred_check_branch
          %263 = sbr.rel (%p261) target = $region28
        $region27: #{tpu_custom_call.1} parent=11 // pred_region
          _
        $region28: #{tpu_custom_call.1} parent=11 // pred_fallthru
          _
        // Predicated region
        $region29: #{tpu_custom_call.1} parent=11 // pred_check
          %p264 = pneg %p166
        $region30: #{tpu_custom_call.1} parent=11 // pred_check_branch
          %266 = sbr.rel (%p264) target = $region32
        $region31: #{tpu_custom_call.1} parent=11 // pred_region
          %268 = vsyncadd [#allocation13], 0
          %s269 = sshll.u32 %s5, 4
          %s270 = int_to_ptr.hbm [resolvable:$true] %s269
          %s271 = sshll.u32 [#allocation12], 4
          %s272 = int_to_ptr.vmem [resolvable:$true] %s271
          %277 = dma.hbm_to_vmem [thread:$0]  %s270, 1024, %s272, [#allocation13], 64, 64, 4
        $region32: #{tpu_custom_call.1} parent=11 // pred_fallthru
          _
        // Predicated region
        $region33: #{tpu_custom_call.1} parent=11 // pred_check
          %p278 = pneg %p187
        $region34: #{tpu_custom_call.1} parent=11 // pred_check_branch
          %280 = sbr.rel (%p278) target = $region36
        $region35: #{tpu_custom_call.1} parent=11 // pred_region
          _
        $region36: #{tpu_custom_call.1} parent=11 // pred_fallthru
          _
      $region12: #{tpu_custom_call.1} parent=5 // pred_fallthru
        _
      %p281 = scmp.lt.s32.totalorder %s21, 2
      // Predicated region
      $region37: #{tpu_custom_call.1} parent=5 // pred_check
        %p282 = pneg %p281
      $region38: #{tpu_custom_call.1} parent=5 // pred_check_branch
        %284 = sbr.rel (%p282) target = $region40
      $region39: #{tpu_custom_call.1} parent=5 // pred_region
        // Predicated region
        $region41: #{tpu_custom_call.1} parent=39 // pred_check
          %p285 = pneg %p55
        $region42: #{tpu_custom_call.1} parent=39 // pred_check_branch
          %287 = sbr.rel (%p285) target = $region44
        $region43: #{tpu_custom_call.1} parent=39 // pred_region
          %s288 = sand.u32 %s45, 1
          %s289 = scalar_lea.sflag [#allocation7], %s288
          %s290 = sand.u32 %s45, 1
          %s291 = smul.addr %s290, 8
          %s292 = scalar_lea.vmem [#allocation6], %s291
          %s293 = smul.u32 2, %s29
          %295 = vsyncadd %s289, 0
          %s296 = smul.addr %s28, 2
          %s297 = sadd.s32 %s293, %s296
          %s298 = smul.addr %s297, 4
          %s299 = scalar_lea.hbm %s0, %s298
          %s300 = sshll.u32 %s299, 4
          %s301 = int_to_ptr.hbm [resolvable:$true] %s300
          %s302 = sshll.u32 %s292, 4
          %s303 = int_to_ptr.vmem [resolvable:$true] %s302
          %308 = dma.hbm_to_vmem [thread:$0]  %s301, 128, %s303, %s289, 64, 64, 4
        $region44: #{tpu_custom_call.1} parent=39 // pred_fallthru
          _
      $region40: #{tpu_custom_call.1} parent=5 // pred_fallthru
        _
      %p309 = scmp.le.s32.totalorder 1, %s21
      %p310 = scmp.lt.s32.totalorder %s21, 3
      %p311 = pnand %p309, %p310
      %p312 = pneg %p311
      // Predicated region
      $region45: #{tpu_custom_call.1} parent=5 // pred_check
        _
      $region46: #{tpu_custom_call.1} parent=5 // pred_check_branch
        %314 = sbr.rel (%p311) target = $region48
      $region47: #{tpu_custom_call.1} parent=5 // pred_region
        %s315 = ssub.s32 %s21, 1
        %s316 = sand.u32 %s48, 1
        %s317 = scalar_lea.sflag [#allocation7], %s316
        %s318 = sand.u32 %s48, 1
        %s319 = smul.addr %s318, 8
        %s320 = scalar_lea.vmem [#allocation6], %s319
        // Predicated region
        $region49: #{tpu_custom_call.1} parent=47 // pred_check
          %p321 = pneg %p61
        $region50: #{tpu_custom_call.1} parent=47 // pred_check_branch
          %323 = sbr.rel (%p321) target = $region52
        $region51: #{tpu_custom_call.1} parent=47 // pred_region
          %325 = dma.done %s317, 128
        $region52: #{tpu_custom_call.1} parent=47 // pred_fallthru
          _
        // Predicated region
        $region53: #{tpu_custom_call.1} parent=47 // pred_check
          %p326 = pneg %p82
        $region54: #{tpu_custom_call.1} parent=47 // pred_check_branch
          %328 = sbr.rel (%p326) target = $region56
        $region55: #{tpu_custom_call.1} parent=47 // pred_region
          %330 = dma.done [#allocation10], 3072
        $region56: #{tpu_custom_call.1} parent=47 // pred_fallthru
          _
        // Predicated region
        $region57: #{tpu_custom_call.1} parent=47 // pred_check
          %p331 = pneg %p124
        $region58: #{tpu_custom_call.1} parent=47 // pred_check_branch
          %333 = sbr.rel (%p331) target = $region60
        $region59: #{tpu_custom_call.1} parent=47 // pred_region
          %335 = dma.done [#allocation10], 3072
        $region60: #{tpu_custom_call.1} parent=47 // pred_fallthru
          _
        // Predicated region
        $region61: #{tpu_custom_call.1} parent=47 // pred_check
          %p336 = pneg %p166
        $region62: #{tpu_custom_call.1} parent=47 // pred_check_branch
          %338 = sbr.rel (%p336) target = $region64
        $region63: #{tpu_custom_call.1} parent=47 // pred_region
          %340 = dma.done [#allocation13], 1024
        $region64: #{tpu_custom_call.1} parent=47 // pred_fallthru
          _
        %s341 = sand.u32 %s48, 1
        %s342 = scalar_lea.sflag [#allocation7], %s341
        %s343 = sand.u32 %s48, 1
        %s344 = smul.addr %s343, 8
        %s345 = scalar_lea.vmem [#allocation6], %s344
        %p346 = pneg %p61
        %p347 = pneg %p58
        %p348 = pneg %p82
        %p349 = pneg %p79
        %p350 = pneg %p103
        %p351 = pneg %p100
        %p352 = pneg %p124
        %p353 = pneg %p121
        %p354 = pneg %p145
        %p355 = pneg %p142
        %p356 = pneg %p166
        %p357 = pneg %p163
        %p358 = pneg %p187
        %p359 = pneg %p184
        %p360 = pneg %p215
        %p361 = pneg %p212
        %s362 = sand.u32 %s202, 1
        %s363 = scalar_lea.sflag [#allocation8], %s362
        %s364 = sand.u32 %s202, 1
        %s365 = smul.addr %s364, 16
        %s366 = scalar_lea.vmem [#allocation14], %s365
        %s367 = smul.u32 2, %s31
        %s368 = smul.u32 2, %s31
        %370 = vst [vmem:[#allocation4] sm:$0x3] 0
        %371 = vst [vmem:[#allocation5] sm:$0x3] 0
        %v372 = vld [vmem:[#allocation4] sm:$0x3]
        %373 = vst [vmem:[#allocation2] sm:$0x3] %v372
        %v374 = vld [vmem:[%s320] sm:$0xf]
        %v375 = vld [vmem:[%s320 + $0x4] sm:$0x3]
        %vm378 = vcmask 1041408
        %vm379 = vcmask 1045508
        %vm380 = vmor %vm378, %vm379
        %v381 = vrot.slane %v374, 6
        %v382 = vrot.slane %v381, 4
        %v383 = vrot.slane %v375, 6
        %v384 = vsel %vm380, %v382, %v383
        %387 = vst [vmem:[#allocation2] sm:$0xc] %v381
        %388 = vst [vmem:[#allocation2 + $0xc] sm:$0xf] %v384
        %v389 = vld [vmem:[#allocation4] sm:$0x2]
        %391 = vst [vmem:[#allocation1] ss:$2 sm:$0xff] %v389
        %v392 = vld.sshfl [vmem:[#allocation1] sm:$0xff pattern:$0x75643120]
        %v394 = vrot.slane %v392, 5
        %v395 = vrot.slane %v394, 4
        %397 = vst [vmem:[#allocation2 + $0x4] sm:$0x1] %v395
        %v398 = vld [vmem:[%s320] sm:$0xf]
        %v399 = vld [vmem:[%s320 + $0x4] sm:$0x7]
        %vm402 = vcmask 1040384
        %vm403 = vcmask 1044484
        %vm404 = vmor %vm402, %vm403
        %v405 = vrot.slane %v398, 7
        %v406 = vrot.slane %v405, 4
        %v407 = vrot.slane %v399, 7
        %v408 = vsel %vm404, %v406, %v407
        %411 = vst [vmem:[#allocation2 + $0x4] sm:$0xe] %v405
        %412 = vst [vmem:[#allocation2 + $0x10] sm:$0xf] %v408
        %v413 = vld [vmem:[%s320] sm:$0xf]
        %v414 = vld [vmem:[%s320 + $0x4] sm:$0xf]
        %415 = vst [vmem:[#allocation2 + $0x8] sm:$0xf] %v413
        %416 = vst [vmem:[#allocation2 + $0x14] sm:$0xf] %v414
        %v417 = vld [vmem:[#allocation2] sm:$0xff]
        %v418 = vld [vmem:[#allocation2 + $0x8] sm:$0xf]
        %v419 = vld [vmem:[#allocation2 + $0xc] sm:$0xff]
        %v420 = vld [vmem:[#allocation2 + $0x14] sm:$0xf]
        %v421 = vld [vmem:[#allocation9] sm:$0xf]
        %v422 = vld [vmem:[#allocation9 + $0x4] sm:$0xf]
        %v423 = vld [vmem:[#allocation9 + $0x8] sm:$0xf]
        %v424 = vld [vmem:[#allocation9 + $0xc] sm:$0xf]
        %v425 = vld [vmem:[#allocation9 + $0x10] sm:$0xf]
        %v426 = vld [vmem:[#allocation9 + $0x14] sm:$0xf]
        %v427 = vld [vmem:[#allocation9 + $0x18] sm:$0xf]
        %v428 = vld [vmem:[#allocation9 + $0x1c] sm:$0xf]
        %v429 = vld [vmem:[#allocation9 + $0x20] sm:$0xf]
        %v430 = vld [vmem:[#allocation9 + $0x24] sm:$0xf]
        %v431 = vld [vmem:[#allocation9 + $0x28] sm:$0xf]
        %v432 = vld [vmem:[#allocation9 + $0x2c] sm:$0xf]
        %v433 = vld [vmem:[#allocation9 + $0x30] sm:$0xf]
        %v434 = vld [vmem:[#allocation9 + $0x34] sm:$0xf]
        %v435 = vld [vmem:[#allocation9 + $0x38] sm:$0xf]
        %v436 = vld [vmem:[#allocation9 + $0x3c] sm:$0xf]
        %v437 = vld [vmem:[#allocation9 + $0x40] sm:$0xf]
        %v438 = vld [vmem:[#allocation9 + $0x44] sm:$0xf]
        %v439 = vld [vmem:[#allocation9 + $0x48] sm:$0xf]
        %v440 = vld [vmem:[#allocation9 + $0x4c] sm:$0xf]
        %v441 = vld [vmem:[#allocation9 + $0x50] sm:$0xf]
        %v442 = vld [vmem:[#allocation9 + $0x54] sm:$0xf]
        %v443 = vld [vmem:[#allocation9 + $0x58] sm:$0xf]
        %v444 = vld [vmem:[#allocation9 + $0x5c] sm:$0xf]
        %v445 = vld [vmem:[#allocation9 + $0x60] sm:$0xf]
        %v446 = vld [vmem:[#allocation9 + $0x64] sm:$0xf]
        %v447 = vld [vmem:[#allocation9 + $0x68] sm:$0xf]
        %v448 = vld [vmem:[#allocation9 + $0x6c] sm:$0xf]
        %v449 = vld [vmem:[#allocation9 + $0x70] sm:$0xf]
        %v450 = vld [vmem:[#allocation9 + $0x74] sm:$0xf]
        %v451 = vld [vmem:[#allocation9 + $0x78] sm:$0xf]
        %v452 = vld [vmem:[#allocation9 + $0x7c] sm:$0xf]
        %v453 = vld [vmem:[#allocation9 + $0x80] sm:$0xf]
        %v454 = vld [vmem:[#allocation9 + $0x84] sm:$0xf]
        %v455 = vld [vmem:[#allocation9 + $0x88] sm:$0xf]
        %v456 = vld [vmem:[#allocation9 + $0x8c] sm:$0xf]
        %v457 = vld [vmem:[#allocation9 + $0x90] sm:$0xf]
        %v458 = vld [vmem:[#allocation9 + $0x94] sm:$0xf]
        %v459 = vld [vmem:[#allocation9 + $0x98] sm:$0xf]
        %v460 = vld [vmem:[#allocation9 + $0x9c] sm:$0xf]
        %v461 = vld [vmem:[#allocation9 + $0xa0] sm:$0xf]
        %v462 = vld [vmem:[#allocation9 + $0xa4] sm:$0xf]
        %v463 = vld [vmem:[#allocation9 + $0xa8] sm:$0xf]
        %v464 = vld [vmem:[#allocation9 + $0xac] sm:$0xf]
        %v465 = vld [vmem:[#allocation9 + $0xb0] sm:$0xf]
        %v466 = vld [vmem:[#allocation9 + $0xb4] sm:$0xf]
        %v467 = vld [vmem:[#allocation9 + $0xb8] sm:$0xf]
        %v468 = vld [vmem:[#allocation9 + $0xbc] sm:$0xf]
        %v469 = vld [vmem:[%s2] sm:$0x1]
        %v471 = vperm.slane %v469, 0
        %v477 = vunpack.c.l.b16 %v417
        %v478 = vunpack.c.h.b16 %v417
        %v479 = vunpack.c.l.b16 %v418
        %v480 = vunpack.c.l.b16 %v419
        %v481 = vunpack.c.h.b16 %v419
        %v482 = vunpack.c.l.b16 %v420
        %v483 = vpack.c.b16 %v480, %v477
        %v484 = vpack.c.b16 %v481, %v478
        %v485 = vpack.c.b16 %v482, %v479
        %v537 = vunpack.c.l.b16 %v421
        %v538 = vunpack.c.l.b16 %v422
        %v539 = vunpack.c.l.b16 %v423
        %v540 = vunpack.c.l.b16 %v424
        %v541 = vunpack.c.l.b16 %v425
        %v542 = vunpack.c.l.b16 %v426
        %v543 = vunpack.c.l.b16 %v427
        %v544 = vunpack.c.l.b16 %v428
        %v545 = vunpack.c.l.b16 %v429
        %v546 = vunpack.c.l.b16 %v430
        %v547 = vunpack.c.l.b16 %v431
        %v548 = vunpack.c.l.b16 %v432
        %v549 = vunpack.c.l.b16 %v433
        %v550 = vunpack.c.l.b16 %v434
        %v551 = vunpack.c.l.b16 %v435
        %v552 = vunpack.c.l.b16 %v436
        %v553 = vunpack.c.l.b16 %v437
        %v554 = vunpack.c.l.b16 %v438
        %v555 = vunpack.c.l.b16 %v439
        %v556 = vunpack.c.l.b16 %v440
        %v557 = vunpack.c.l.b16 %v441
        %v558 = vunpack.c.l.b16 %v442
        %v559 = vunpack.c.l.b16 %v443
        %v560 = vunpack.c.l.b16 %v444
        %v561 = vunpack.c.l.b16 %v445
        %v562 = vunpack.c.l.b16 %v446
        %v563 = vunpack.c.l.b16 %v447
        %v564 = vunpack.c.l.b16 %v448
        %v565 = vunpack.c.l.b16 %v449
        %v566 = vunpack.c.l.b16 %v450
        %v567 = vunpack.c.l.b16 %v451
        %v568 = vunpack.c.l.b16 %v452
        %v569 = vunpack.c.l.b16 %v453
        %v570 = vunpack.c.l.b16 %v454
        %v571 = vunpack.c.l.b16 %v455
        %v572 = vunpack.c.l.b16 %v456
        %v573 = vunpack.c.l.b16 %v457
        %v574 = vunpack.c.l.b16 %v458
        %v575 = vunpack.c.l.b16 %v459
        %v576 = vunpack.c.l.b16 %v460
        %v577 = vunpack.c.l.b16 %v461
        %v578 = vunpack.c.l.b16 %v462
        %v579 = vunpack.c.l.b16 %v463
        %v580 = vunpack.c.l.b16 %v464
        %v581 = vunpack.c.l.b16 %v465
        %v582 = vunpack.c.l.b16 %v466
        %v583 = vunpack.c.l.b16 %v467
        %v584 = vunpack.c.l.b16 %v468
        %v585 = vpack.c.b16 %v538, %v537
        %v586 = vpack.c.b16 %v540, %v539
        %v587 = vpack.c.b16 %v542, %v541
        %v588 = vpack.c.b16 %v544, %v543
        %v589 = vpack.c.b16 %v546, %v545
        %v590 = vpack.c.b16 %v548, %v547
        %v591 = vpack.c.b16 %v550, %v549
        %v592 = vpack.c.b16 %v552, %v551
        %v593 = vpack.c.b16 %v554, %v553
        %v594 = vpack.c.b16 %v556, %v555
        %v595 = vpack.c.b16 %v558, %v557
        %v596 = vpack.c.b16 %v560, %v559
        %v597 = vpack.c.b16 %v562, %v561
        %v598 = vpack.c.b16 %v564, %v563
        %v599 = vpack.c.b16 %v566, %v565
        %v600 = vpack.c.b16 %v568, %v567
        %v601 = vpack.c.b16 %v570, %v569
        %v602 = vpack.c.b16 %v572, %v571
        %v603 = vpack.c.b16 %v574, %v573
        %v604 = vpack.c.b16 %v576, %v575
        %v605 = vpack.c.b16 %v578, %v577
        %v606 = vpack.c.b16 %v580, %v579
        %v607 = vpack.c.b16 %v582, %v581
        %v608 = vpack.c.b16 %v584, %v583
        %633 = vmatpush.bf16.msra.mxu0 %v592
        %634 = vmatpush.bf16.msra.mxu0 %v591
        %635 = vmatpush.bf16.msra.mxu0 %v590
        %636 = vmatpush.bf16.msra.mxu0 %v589
        %637 = vmatpush.bf16.msra.mxu0 %v588
        %638 = vmatpush.bf16.msra.mxu0 %v587
        %639 = vmatpush.bf16.msra.mxu0 %v586
        %640 = vmatpush.bf16.msra.mxu0 %v585
        %641 = vmatmul.bf16.gmra.mxu0 %v483
        %v642 = vpop.f32.mrf.mxu0
        %v643 = vadd.f32 %v471, %v642
        %v644 = vpop.f32.mrf.mxu0
        %v645 = vadd.f32 %v471, %v644
        %646 = vdwg.mxu0
        %647 = vmatpush.bf16.msra.mxu0 %v600
        %648 = vmatpush.bf16.msra.mxu0 %v599
        %649 = vmatpush.bf16.msra.mxu0 %v598
        %650 = vmatpush.bf16.msra.mxu0 %v597
        %651 = vmatpush.bf16.msra.mxu0 %v596
        %652 = vmatpush.bf16.msra.mxu0 %v595
        %653 = vmatpush.bf16.msra.mxu0 %v594
        %654 = vmatpush.bf16.msra.mxu0 %v593
        %655 = vmatmul.bf16.gmra.mxu0 %v484
        %v656 = vpop.f32.mrf.mxu0
        %v657 = vadd.f32 %v643, %v656
        %v658 = vpop.f32.mrf.mxu0
        %v659 = vadd.f32 %v645, %v658
        %660 = vdwg.mxu0
        %661 = vmatpush.bf16.msra.mxu0 %v608
        %662 = vmatpush.bf16.msra.mxu0 %v607
        %663 = vmatpush.bf16.msra.mxu0 %v606
        %664 = vmatpush.bf16.msra.mxu0 %v605
        %665 = vmatpush.bf16.msra.mxu0 %v604
        %666 = vmatpush.bf16.msra.mxu0 %v603
        %667 = vmatpush.bf16.msra.mxu0 %v602
        %668 = vmatpush.bf16.msra.mxu0 %v601
        %669 = vmatmul.bf16.gmra.mxu0 %v485
        %v670 = vpop.f32.mrf.mxu0
        %v671 = vadd.f32 %v657, %v670
        %v672 = vpop.f32.mrf.mxu0
        %v673 = vadd.f32 %v659, %v672
        %674 = vdwg.mxu0
        %v675 = vmax.f32 %v671, 0.0
        %v676 = vmax.f32 %v673, 0.0
        %v677 = vpack.c.bf16 %v675, %v675
        %v678 = vpack.c.bf16 %v676, %v676
        %679 = vst [vmem:[#allocation3] sm:$0xf] %v677
        %680 = vst [vmem:[#allocation3 + $0x4] sm:$0xf] %v678
        %v681 = vld [vmem:[#allocation5] sm:$0x3]
        %682 = vst [vmem:[#allocation2] sm:$0x3] %v681
        %v683 = vld [vmem:[#allocation3] sm:$0xf]
        %v684 = vld [vmem:[#allocation3 + $0x4] sm:$0x3]
        %v687 = vrot.slane %v683, 6
        %v688 = vrot.slane %v687, 4
        %v689 = vrot.slane %v684, 6
        %v690 = vsel %vm380, %v688, %v689
        %693 = vst [vmem:[#allocation2] sm:$0xc] %v687
        %694 = vst [vmem:[#allocation2 + $0xc] sm:$0xf] %v690
        %v695 = vld [vmem:[#allocation5] sm:$0x2]
        %697 = vst [vmem:[#allocation1] ss:$2 sm:$0xff] %v695
        %v698 = vld.sshfl [vmem:[#allocation1] sm:$0xff pattern:$0x75643120]
        %v700 = vrot.slane %v698, 5
        %v701 = vrot.slane %v700, 4
        %703 = vst [vmem:[#allocation2 + $0x4] sm:$0x1] %v701
        %v704 = vld [vmem:[#allocation3] sm:$0xf]
        %v705 = vld [vmem:[#allocation3 + $0x4] sm:$0x7]
        %v708 = vrot.slane %v704, 7
        %v709 = vrot.slane %v708, 4
        %v710 = vrot.slane %v705, 7
        %v711 = vsel %vm404, %v709, %v710
        %714 = vst [vmem:[#allocation2 + $0x4] sm:$0xe] %v708
        %715 = vst [vmem:[#allocation2 + $0x10] sm:$0xf] %v711
        %v716 = vld [vmem:[#allocation3] sm:$0xf]
        %v717 = vld [vmem:[#allocation3 + $0x4] sm:$0xf]
        %718 = vst [vmem:[#allocation2 + $0x8] sm:$0xf] %v716
        %719 = vst [vmem:[#allocation2 + $0x14] sm:$0xf] %v717
        %v720 = vld [vmem:[#allocation2] sm:$0xff]
        %v721 = vld [vmem:[#allocation2 + $0x8] sm:$0xf]
        %v722 = vld [vmem:[#allocation2 + $0xc] sm:$0xff]
        %v723 = vld [vmem:[#allocation2 + $0x14] sm:$0xf]
        %v724 = vld [vmem:[#allocation11] sm:$0xf]
        %v725 = vld [vmem:[#allocation11 + $0x4] sm:$0xf]
        %v726 = vld [vmem:[#allocation11 + $0x8] sm:$0xf]
        %v727 = vld [vmem:[#allocation11 + $0xc] sm:$0xf]
        %v728 = vld [vmem:[#allocation11 + $0x10] sm:$0xf]
        %v729 = vld [vmem:[#allocation11 + $0x14] sm:$0xf]
        %v730 = vld [vmem:[#allocation11 + $0x18] sm:$0xf]
        %v731 = vld [vmem:[#allocation11 + $0x1c] sm:$0xf]
        %v732 = vld [vmem:[#allocation11 + $0x20] sm:$0xf]
        %v733 = vld [vmem:[#allocation11 + $0x24] sm:$0xf]
        %v734 = vld [vmem:[#allocation11 + $0x28] sm:$0xf]
        %v735 = vld [vmem:[#allocation11 + $0x2c] sm:$0xf]
        %v736 = vld [vmem:[#allocation11 + $0x30] sm:$0xf]
        %v737 = vld [vmem:[#allocation11 + $0x34] sm:$0xf]
        %v738 = vld [vmem:[#allocation11 + $0x38] sm:$0xf]
        %v739 = vld [vmem:[#allocation11 + $0x3c] sm:$0xf]
        %v740 = vld [vmem:[#allocation11 + $0x40] sm:$0xf]
        %v741 = vld [vmem:[#allocation11 + $0x44] sm:$0xf]
        %v742 = vld [vmem:[#allocation11 + $0x48] sm:$0xf]
        %v743 = vld [vmem:[#allocation11 + $0x4c] sm:$0xf]
        %v744 = vld [vmem:[#allocation11 + $0x50] sm:$0xf]
        %v745 = vld [vmem:[#allocation11 + $0x54] sm:$0xf]
        %v746 = vld [vmem:[#allocation11 + $0x58] sm:$0xf]
        %v747 = vld [vmem:[#allocation11 + $0x5c] sm:$0xf]
        %v748 = vld [vmem:[#allocation11 + $0x60] sm:$0xf]
        %v749 = vld [vmem:[#allocation11 + $0x64] sm:$0xf]
        %v750 = vld [vmem:[#allocation11 + $0x68] sm:$0xf]
        %v751 = vld [vmem:[#allocation11 + $0x6c] sm:$0xf]
        %v752 = vld [vmem:[#allocation11 + $0x70] sm:$0xf]
        %v753 = vld [vmem:[#allocation11 + $0x74] sm:$0xf]
        %v754 = vld [vmem:[#allocation11 + $0x78] sm:$0xf]
        %v755 = vld [vmem:[#allocation11 + $0x7c] sm:$0xf]
        %v756 = vld [vmem:[#allocation11 + $0x80] sm:$0xf]
        %v757 = vld [vmem:[#allocation11 + $0x84] sm:$0xf]
        %v758 = vld [vmem:[#allocation11 + $0x88] sm:$0xf]
        %v759 = vld [vmem:[#allocation11 + $0x8c] sm:$0xf]
        %v760 = vld [vmem:[#allocation11 + $0x90] sm:$0xf]
        %v761 = vld [vmem:[#allocation11 + $0x94] sm:$0xf]
        %v762 = vld [vmem:[#allocation11 + $0x98] sm:$0xf]
        %v763 = vld [vmem:[#allocation11 + $0x9c] sm:$0xf]
        %v764 = vld [vmem:[#allocation11 + $0xa0] sm:$0xf]
        %v765 = vld [vmem:[#allocation11 + $0xa4] sm:$0xf]
        %v766 = vld [vmem:[#allocation11 + $0xa8] sm:$0xf]
        %v767 = vld [vmem:[#allocation11 + $0xac] sm:$0xf]
        %v768 = vld [vmem:[#allocation11 + $0xb0] sm:$0xf]
        %v769 = vld [vmem:[#allocation11 + $0xb4] sm:$0xf]
        %v770 = vld [vmem:[#allocation11 + $0xb8] sm:$0xf]
        %v771 = vld [vmem:[#allocation11 + $0xbc] sm:$0xf]
        %v772 = vld [vmem:[%s4] sm:$0x1]
        %v774 = vperm.slane %v772, 0
        %v780 = vunpack.c.l.b16 %v720
        %v781 = vunpack.c.h.b16 %v720
        %v782 = vunpack.c.l.b16 %v721
        %v783 = vunpack.c.l.b16 %v722
        %v784 = vunpack.c.h.b16 %v722
        %v785 = vunpack.c.l.b16 %v723
        %v786 = vpack.c.b16 %v783, %v780
        %v787 = vpack.c.b16 %v784, %v781
        %v788 = vpack.c.b16 %v785, %v782
        %v840 = vunpack.c.l.b16 %v724
        %v841 = vunpack.c.l.b16 %v725
        %v842 = vunpack.c.l.b16 %v726
        %v843 = vunpack.c.l.b16 %v727
        %v844 = vunpack.c.l.b16 %v728
        %v845 = vunpack.c.l.b16 %v729
        %v846 = vunpack.c.l.b16 %v730
        %v847 = vunpack.c.l.b16 %v731
        %v848 = vunpack.c.l.b16 %v732
        %v849 = vunpack.c.l.b16 %v733
        %v850 = vunpack.c.l.b16 %v734
        %v851 = vunpack.c.l.b16 %v735
        %v852 = vunpack.c.l.b16 %v736
        %v853 = vunpack.c.l.b16 %v737
        %v854 = vunpack.c.l.b16 %v738
        %v855 = vunpack.c.l.b16 %v739
        %v856 = vunpack.c.l.b16 %v740
        %v857 = vunpack.c.l.b16 %v741
        %v858 = vunpack.c.l.b16 %v742
        %v859 = vunpack.c.l.b16 %v743
        %v860 = vunpack.c.l.b16 %v744
        %v861 = vunpack.c.l.b16 %v745
        %v862 = vunpack.c.l.b16 %v746
        %v863 = vunpack.c.l.b16 %v747
        %v864 = vunpack.c.l.b16 %v748
        %v865 = vunpack.c.l.b16 %v749
        %v866 = vunpack.c.l.b16 %v750
        %v867 = vunpack.c.l.b16 %v751
        %v868 = vunpack.c.l.b16 %v752
        %v869 = vunpack.c.l.b16 %v753
        %v870 = vunpack.c.l.b16 %v754
        %v871 = vunpack.c.l.b16 %v755
        %v872 = vunpack.c.l.b16 %v756
        %v873 = vunpack.c.l.b16 %v757
        %v874 = vunpack.c.l.b16 %v758
        %v875 = vunpack.c.l.b16 %v759
        %v876 = vunpack.c.l.b16 %v760
        %v877 = vunpack.c.l.b16 %v761
        %v878 = vunpack.c.l.b16 %v762
        %v879 = vunpack.c.l.b16 %v763
        %v880 = vunpack.c.l.b16 %v764
        %v881 = vunpack.c.l.b16 %v765
        %v882 = vunpack.c.l.b16 %v766
        %v883 = vunpack.c.l.b16 %v767
        %v884 = vunpack.c.l.b16 %v768
        %v885 = vunpack.c.l.b16 %v769
        %v886 = vunpack.c.l.b16 %v770
        %v887 = vunpack.c.l.b16 %v771
        %v888 = vpack.c.b16 %v841, %v840
        %v889 = vpack.c.b16 %v843, %v842
        %v890 = vpack.c.b16 %v845, %v844
        %v891 = vpack.c.b16 %v847, %v846
        %v892 = vpack.c.b16 %v849, %v848
        %v893 = vpack.c.b16 %v851, %v850
        %v894 = vpack.c.b16 %v853, %v852
        %v895 = vpack.c.b16 %v855, %v854
        %v896 = vpack.c.b16 %v857, %v856
        %v897 = vpack.c.b16 %v859, %v858
        %v898 = vpack.c.b16 %v861, %v860
        %v899 = vpack.c.b16 %v863, %v862
        %v900 = vpack.c.b16 %v865, %v864
        %v901 = vpack.c.b16 %v867, %v866
        %v902 = vpack.c.b16 %v869, %v868
        %v903 = vpack.c.b16 %v871, %v870
        %v904 = vpack.c.b16 %v873, %v872
        %v905 = vpack.c.b16 %v875, %v874
        %v906 = vpack.c.b16 %v877, %v876
        %v907 = vpack.c.b16 %v879, %v878
        %v908 = vpack.c.b16 %v881, %v880
        %v909 = vpack.c.b16 %v883, %v882
        %v910 = vpack.c.b16 %v885, %v884
        %v911 = vpack.c.b16 %v887, %v886
        %936 = vmatpush.bf16.msra.mxu0 %v895
        %937 = vmatpush.bf16.msra.mxu0 %v894
        %938 = vmatpush.bf16.msra.mxu0 %v893
        %939 = vmatpush.bf16.msra.mxu0 %v892
        %940 = vmatpush.bf16.msra.mxu0 %v891
        %941 = vmatpush.bf16.msra.mxu0 %v890
        %942 = vmatpush.bf16.msra.mxu0 %v889
        %943 = vmatpush.bf16.msra.mxu0 %v888
        %944 = vmatmul.bf16.gmra.mxu0 %v786
        %v945 = vpop.f32.mrf.mxu0
        %v946 = vadd.f32 %v774, %v945
        %v947 = vpop.f32.mrf.mxu0
        %v948 = vadd.f32 %v774, %v947
        %949 = vdwg.mxu0
        %950 = vmatpush.bf16.msra.mxu0 %v903
        %951 = vmatpush.bf16.msra.mxu0 %v902
        %952 = vmatpush.bf16.msra.mxu0 %v901
        %953 = vmatpush.bf16.msra.mxu0 %v900
        %954 = vmatpush.bf16.msra.mxu0 %v899
        %955 = vmatpush.bf16.msra.mxu0 %v898
        %956 = vmatpush.bf16.msra.mxu0 %v897
        %957 = vmatpush.bf16.msra.mxu0 %v896
        %958 = vmatmul.bf16.gmra.mxu0 %v787
        %v959 = vpop.f32.mrf.mxu0
        %v960 = vadd.f32 %v946, %v959
        %v961 = vpop.f32.mrf.mxu0
        %v962 = vadd.f32 %v948, %v961
        %963 = vdwg.mxu0
        %964 = vmatpush.bf16.msra.mxu0 %v911
        %965 = vmatpush.bf16.msra.mxu0 %v910
        %966 = vmatpush.bf16.msra.mxu0 %v909
        %967 = vmatpush.bf16.msra.mxu0 %v908
        %968 = vmatpush.bf16.msra.mxu0 %v907
        %969 = vmatpush.bf16.msra.mxu0 %v906
        %970 = vmatpush.bf16.msra.mxu0 %v905
        %971 = vmatpush.bf16.msra.mxu0 %v904
        %972 = vmatmul.bf16.gmra.mxu0 %v788
        %v973 = vpop.f32.mrf.mxu0
        %v974 = vadd.f32 %v960, %v973
        %v975 = vpop.f32.mrf.mxu0
        %v976 = vadd.f32 %v962, %v975
        %977 = vdwg.mxu0
        %v978 = vmax.f32 %v974, 0.0
        %v979 = vmax.f32 %v976, 0.0
        %v980 = vld [vmem:[%s320] sm:$0xf]
        %v981 = vld [vmem:[%s320 + $0x4] sm:$0xf]
        %v982 = vld [vmem:[#allocation12] sm:$0xf]
        %v983 = vld [vmem:[#allocation12 + $0x4] sm:$0xf]
        %v984 = vld [vmem:[#allocation12 + $0x8] sm:$0xf]
        %v985 = vld [vmem:[#allocation12 + $0xc] sm:$0xf]
        %v986 = vld [vmem:[#allocation12 + $0x10] sm:$0xf]
        %v987 = vld [vmem:[#allocation12 + $0x14] sm:$0xf]
        %v988 = vld [vmem:[#allocation12 + $0x18] sm:$0xf]
        %v989 = vld [vmem:[#allocation12 + $0x1c] sm:$0xf]
        %v990 = vld [vmem:[#allocation12 + $0x20] sm:$0xf]
        %v991 = vld [vmem:[#allocation12 + $0x24] sm:$0xf]
        %v992 = vld [vmem:[#allocation12 + $0x28] sm:$0xf]
        %v993 = vld [vmem:[#allocation12 + $0x2c] sm:$0xf]
        %v994 = vld [vmem:[#allocation12 + $0x30] sm:$0xf]
        %v995 = vld [vmem:[#allocation12 + $0x34] sm:$0xf]
        %v996 = vld [vmem:[#allocation12 + $0x38] sm:$0xf]
        %v997 = vld [vmem:[#allocation12 + $0x3c] sm:$0xf]
        %v998 = vld [vmem:[%s6] sm:$0x1]
        %v1000 = vperm.slane %v998, 0
        %v1004 = vunpack.c.l.b16 %v980
        %v1005 = vunpack.c.l.b16 %v981
        %v1006 = vpack.c.b16 %v1005, %v1004
        %v1024 = vunpack.c.l.b16 %v982
        %v1025 = vunpack.c.l.b16 %v983
        %v1026 = vunpack.c.l.b16 %v984
        %v1027 = vunpack.c.l.b16 %v985
        %v1028 = vunpack.c.l.b16 %v986
        %v1029 = vunpack.c.l.b16 %v987
        %v1030 = vunpack.c.l.b16 %v988
        %v1031 = vunpack.c.l.b16 %v989
        %v1032 = vunpack.c.l.b16 %v990
        %v1033 = vunpack.c.l.b16 %v991
        %v1034 = vunpack.c.l.b16 %v992
        %v1035 = vunpack.c.l.b16 %v993
        %v1036 = vunpack.c.l.b16 %v994
        %v1037 = vunpack.c.l.b16 %v995
        %v1038 = vunpack.c.l.b16 %v996
        %v1039 = vunpack.c.l.b16 %v997
        %v1040 = vpack.c.b16 %v1025, %v1024
        %v1041 = vpack.c.b16 %v1027, %v1026
        %v1042 = vpack.c.b16 %v1029, %v1028
        %v1043 = vpack.c.b16 %v1031, %v1030
        %v1044 = vpack.c.b16 %v1033, %v1032
        %v1045 = vpack.c.b16 %v1035, %v1034
        %v1046 = vpack.c.b16 %v1037, %v1036
        %v1047 = vpack.c.b16 %v1039, %v1038
        %1056 = vmatpush.bf16.msra.mxu0 %v1047
        %1057 = vmatpush.bf16.msra.mxu0 %v1046
        %1058 = vmatpush.bf16.msra.mxu0 %v1045
        %1059 = vmatpush.bf16.msra.mxu0 %v1044
        %1060 = vmatpush.bf16.msra.mxu0 %v1043
        %1061 = vmatpush.bf16.msra.mxu0 %v1042
        %1062 = vmatpush.bf16.msra.mxu0 %v1041
        %1063 = vmatpush.bf16.msra.mxu0 %v1040
        %1064 = vmatmul.bf16.gmra.mxu0 %v1006
        %v1065 = vpop.f32.mrf.mxu0
        %v1066 = vadd.f32 %v1000, %v1065
        %v1067 = vpop.f32.mrf.mxu0
        %v1068 = vadd.f32 %v1000, %v1067
        %1069 = vdwg.mxu0
        %v1070 = vadd.f32 %v978, %v1066
        %v1071 = vadd.f32 %v979, %v1068
        %v1072 = vmax.f32 %v1070, 0.0
        %v1073 = vmax.f32 %v1071, 0.0
        %1074 = vst [vmem:[%s366] sm:$0xff] %v1072
        %1075 = vst [vmem:[%s366 + $0x8] sm:$0xff] %v1073
        %s1076 = sand.u32 %s202, 1
        %s1077 = scalar_lea.sflag [#allocation8], %s1076
        %s1078 = sand.u32 %s202, 1
        %s1079 = smul.addr %s1078, 16
        %s1080 = scalar_lea.vmem [#allocation14], %s1079
        // Predicated region
        $region65: #{tpu_custom_call.1} parent=47 // pred_check
          %p1081 = pneg %p212
        $region66: #{tpu_custom_call.1} parent=47 // pred_check_branch
          %1083 = sbr.rel (%p1081) target = $region68
        $region67: #{tpu_custom_call.1} parent=47 // pred_region
          %s1084 = smul.u32 2, %s31
          %1086 = vsyncadd %s1077, 0
          %s1087 = smul.addr %s30, 2
          %s1088 = sadd.s32 %s1084, %s1087
          %s1089 = smul.addr %s1088, 8
          %s1090 = scalar_lea.hbm %s7, %s1089
          %s1091 = sshll.u32 %s1080, 4
          %s1092 = int_to_ptr.vmem [resolvable:$true] %s1091
          %s1093 = sshll.u32 %s1090, 4
          %s1094 = int_to_ptr.hbm [resolvable:$true] %s1093
          %1099 = dma.vmem_to_hbm [thread:$0]  %s1092, 256, %s1094, %s1077, 128, 128, 8
        $region68: #{tpu_custom_call.1} parent=47 // pred_fallthru
          _
      $region48: #{tpu_custom_call.1} parent=5 // pred_fallthru
        _
      %p1100 = scmp.le.s32.totalorder 2, %s21
      // Predicated region
      $region69: #{tpu_custom_call.1} parent=5 // pred_check
        %p1101 = pneg %p1100
      $region70: #{tpu_custom_call.1} parent=5 // pred_check_branch
        %1103 = sbr.rel (%p1101) target = $region72
      $region71: #{tpu_custom_call.1} parent=5 // pred_region
        %s1104 = ssub.s32 %s21, 2
        // Predicated region
        $region73: #{tpu_custom_call.1} parent=71 // pred_check
          %p1105 = pneg %p218
        $region74: #{tpu_custom_call.1} parent=71 // pred_check_branch
          %1107 = sbr.rel (%p1105) target = $region76
        $region75: #{tpu_custom_call.1} parent=71 // pred_region
          %s1108 = sand.u32 %s203, 1
          %s1109 = scalar_lea.sflag [#allocation8], %s1108
          %s1110 = sand.u32 %s203, 1
          %s1111 = smul.addr %s1110, 16
          %s1112 = scalar_lea.vmem [#allocation14], %s1111
          %1114 = dma.done %s1109, 256
        $region76: #{tpu_custom_call.1} parent=71 // pred_fallthru
          _
      $region72: #{tpu_custom_call.1} parent=5 // pred_fallthru
        _
    $region6: #{tpu_custom_call.1} parent=1 // loop_footer
      %s25 = sadd.s32 1, %s21
    $region7: #{tpu_custom_call.1} parent=1 // loop_footer_branch
      %20 = sbr.rel target = $region3
    $region8: #{tpu_custom_call.1} parent=1 // loop_exit
      _
    %1115 = vsyncpa [#allocation7], 1
    %s1116 = scalar_lea.sflag [#allocation7], 1
    %1117 = vsyncpa %s1116, 1
    %1118 = vsyncpa [#allocation10], 1
    %1119 = vsyncpa [#allocation13], 1
    %1120 = vsyncpa [#allocation8], 1
    %s1121 = scalar_lea.sflag [#allocation8], 1
    %1122 = vsyncpa %s1121, 1

</llo_original>
